<compile_context>
chip_gen: v6e
topology: v6e:2x2x1
jax: 0.10.0
libtpu: 0.0.40
codegen_flags: <defaults>
</compile_context>

<pallas_src>
import functools

import jax
import jax.numpy as jnp
from jax.experimental import pallas as pl
from jax.experimental.pallas import tpu as pltpu


_TARGET_TILE_BYTES = 2 * 1024 * 1024  # ~2 MiB per (tb, td) x-tile: near HBM roofline


def _gen_sigmoid_kernel(x_ref, beta_ref, bias_ref, c0_ref, o_ref, *, use_log1p):
    # x tile: (tb, td); beta/bias/c0: (1, td) broadcast over the batch rows.
    x = x_ref[...].astype(jnp.float32)
    beta = beta_ref[...]
    bias = bias_ref[...]
    c0 = c0_ref[...]          # sigmoid(bias), precomputed in the wrapper
    if use_log1p:
        x = jnp.log1p(x)
    z = x * beta + bias
    o_ref[...] = (jax.nn.sigmoid(z) - c0).astype(o_ref.dtype)


def _largest_divisor_multiple(n, mult, upper):
    """Largest divisor of n that is a multiple of `mult` and <= upper (0 if none)."""
    best = 0
    d = mult
    hi = min(n, upper)
    while d <= hi:
        if n % d == 0:
            best = d
        d += mult
    return best


def generalized_sigmoid(x, beta, bias, *, nonlin="sigmoid",
                        block_batch=None, block_dim=None):
    """x: (B, D); beta, bias: (1, D). Returns same shape/dtype as x."""
    # Identity mode: no kernel, no HBM round trip.
    if nonlin not in ("logsigm", "sigm"):
        return x

    B, D = x.shape
    assert beta.shape == (1, D) and bias.shape == (1, D)

    beta_f32 = beta.astype(jnp.float32)
    bias_f32 = bias.astype(jnp.float32)
    c0 = jax.nn.sigmoid(bias_f32)           # hoisted out of the per-tile body

    itemsize = jnp.dtype(x.dtype).itemsize
    sublane = max(8, 32 // itemsize)         # f32 -> 8 rows, bf16 -> 16, int8 -> 32

    # ---- choose lane tile (td) ----
    if block_dim is not None:
        td = block_dim
    elif D % 128 == 0:
        td_cap = max(128, (_TARGET_TILE_BYTES // (sublane * itemsize)) // 128 * 128)
        td = _largest_divisor_multiple(D, 128, td_cap) or D
    else:
        td = D                               # full-D block is the only legal untiled choice
    assert D % td == 0 and (td % 128 == 0 or td == D)

    # ---- choose batch tile (tb) ----
    if block_batch is not None:
        tb = block_batch
    elif B % sublane == 0:
        tb_cap = max(sublane, (_TARGET_TILE_BYTES // (td * itemsize)) // sublane * sublane)
        tb = _largest_divisor_multiple(B, sublane, tb_cap) or B
        # Prefer >=2 grid steps when the batch allows it (v7x dual-TC sharding).
        if tb == B and (D // td) == 1 and (B // 2) >= sublane:
            half = _largest_divisor_multiple(B, sublane, B // 2)
            if half:
                tb = half
    else:
        tb = B                               # full batch dim (legal even if B % 8 != 0)
    assert B % tb == 0 and (tb % sublane == 0 or tb == B)

    # ---- VMEM budget: 2x double-buffered x tile + 2x out tile + broadcast params ----
    tile_bytes = tb * td * itemsize
    param_bytes = 3 * td * 4
    vmem_needed = 4 * tile_bytes + 2 * param_bytes + (4 << 20)   # + headroom
    vmem_limit = int(min(max(vmem_needed, 32 << 20), 48 << 20))  # safe on v5e/v6e/v7x

    kernel = functools.partial(_gen_sigmoid_kernel, use_log1p=(nonlin == "logsigm"))

    return pl.pallas_call(
        kernel,
        out_shape=jax.ShapeDtypeStruct((B, D), x.dtype),
        grid_spec=pltpu.PrefetchScalarGridSpec(
            num_scalar_prefetch=0,
            grid=(B // tb, D // td),
            in_specs=[
                pl.BlockSpec((tb, td), lambda i, j: (i, j)),   # x tile
                pl.BlockSpec((1, td), lambda i, j: (0, j)),    # beta (broadcast)
                pl.BlockSpec((1, td), lambda i, j: (0, j)),    # bias (broadcast)
                pl.BlockSpec((1, td), lambda i, j: (0, j)),    # sigmoid(bias) (broadcast)
            ],
            out_specs=pl.BlockSpec((tb, td), lambda i, j: (i, j)),
        ),
        compiler_params=pltpu.CompilerParams(
            dimension_semantics=("parallel", "parallel"),
            vmem_limit_bytes=vmem_limit,
        ),
    )(x, beta_f32, bias_f32, c0)


def _reference(x, beta, bias, nonlin):
    xf = x.astype(jnp.float32)
    bf = beta.astype(jnp.float32)
    cf = bias.astype(jnp.float32)
    if nonlin == "logsigm":
        out = jax.nn.sigmoid(jnp.log1p(xf) * bf + cf) - jax.nn.sigmoid(cf)
    elif nonlin == "sigm":
        out = jax.nn.sigmoid(xf * bf + cf) - jax.nn.sigmoid(cf)
    else:
        return x
    return out.astype(x.dtype)


if __name__ == "__main__":
    key = jax.random.PRNGKey(0)

    ok = True

    # Primary test: small f32 shapes (batch of dose vectors over 128 drugs).
    B, D = 8, 128
    x = jax.random.uniform(key, (B, D), dtype=jnp.float32)   # non-negative doses
    beta = jnp.ones((1, D), dtype=jnp.float32)
    bias = jnp.zeros((1, D), dtype=jnp.float32)
    for nonlin in ("logsigm", "sigm", "sigmoid"):
        out = jax.block_until_ready(generalized_sigmoid(x, beta, bias, nonlin=nonlin))
        ref = _reference(x, beta, bias, nonlin)
        if not jnp.allclose(out, ref, atol=1e-6, rtol=1e-6):
            ok = False
            print(f"MISMATCH for f32 nonlin={nonlin}")

    # Multi-step grid test (exercises batch tiling: grid = (3, 1)).
    B2 = 24
    x2 = jax.random.uniform(jax.random.PRNGKey(1), (B2, D), dtype=jnp.float32)
    out2 = jax.block_until_ready(generalized_sigmoid(x2, beta, bias, nonlin="logsigm"))
    ref2 = _reference(x2, beta, bias, "logsigm")
    if not jnp.allclose(out2, ref2, atol=1e-6, rtol=1e-6):
        ok = False
        print("MISMATCH for tiled f32 logsigm")

    # bf16 I/O test (math stays f32 inside the kernel).
    xb = x.astype(jnp.bfloat16)
    outb = jax.block_until_ready(generalized_sigmoid(xb, beta, bias, nonlin="sigm"))
    refb = _reference(xb, beta, bias, "sigm")
    if not jnp.allclose(outb.astype(jnp.float32), refb.astype(jnp.float32),
                        atol=1e-2, rtol=1e-2):
        ok = False
        print("MISMATCH for bf16 sigm")

    if ok:
        print("KERNEL_OK")
</pallas_src>

<mosaic_0001>
module attributes {stable_mosaic.version = 11 : i64} {
  func.func @_gen_sigmoid_kernel(%arg0: i32, %arg1: i32, %arg2: memref<8x128xf32, #tpu.memory_space<vmem>>, %arg3: memref<1x128xf32, #tpu.memory_space<vmem>>, %arg4: memref<1x128xf32, #tpu.memory_space<vmem>>, %arg5: memref<1x128xf32, #tpu.memory_space<vmem>>, %arg6: memref<8x128xf32, #tpu.memory_space<vmem>>) attributes {dimension_semantics = [#tpu.dimension_semantics<parallel>, #tpu.dimension_semantics<parallel>], iteration_bounds = array<i64: 1, 1>, scalar_prefetch = 0 : i64, scratch_operands = 0 : i64, tpu.core_type = #tpu.core_type<tc>, window_params = [{transform_indices = @transform_0, window_bounds = array<i64: 8, 128>}, {transform_indices = @transform_1, window_bounds = array<i64: 1, 128>}, {transform_indices = @transform_2, window_bounds = array<i64: 1, 128>}, {transform_indices = @transform_3, window_bounds = array<i64: 1, 128>}, {transform_indices = @transform_4, window_bounds = array<i64: 8, 128>}]} {
    %c0 = arith.constant 0 : index
    %c0_0 = arith.constant 0 : index
    %0 = vector.load %arg2[%c0, %c0_0] : memref<8x128xf32, #tpu.memory_space<vmem>>, vector<8x128xf32>
    %c0_1 = arith.constant 0 : index
    %c0_2 = arith.constant 0 : index
    %1 = vector.load %arg3[%c0_1, %c0_2] : memref<1x128xf32, #tpu.memory_space<vmem>>, vector<1x128xf32>
    %c0_3 = arith.constant 0 : index
    %c0_4 = arith.constant 0 : index
    %2 = vector.load %arg4[%c0_3, %c0_4] : memref<1x128xf32, #tpu.memory_space<vmem>>, vector<1x128xf32>
    %c0_5 = arith.constant 0 : index
    %c0_6 = arith.constant 0 : index
    %3 = vector.load %arg5[%c0_5, %c0_6] : memref<1x128xf32, #tpu.memory_space<vmem>>, vector<1x128xf32>
    %4 = math.log1p %0 : vector<8x128xf32>
    %5 = vector.broadcast %1 : vector<1x128xf32> to vector<8x128xf32>
    %6 = arith.mulf %4, %5 : vector<8x128xf32>
    %7 = vector.broadcast %2 : vector<1x128xf32> to vector<8x128xf32>
    %8 = arith.addf %6, %7 : vector<8x128xf32>
    %9 = arith.negf %8 : vector<8x128xf32>
    %10 = math.exp %9 : vector<8x128xf32>
    %cst = arith.constant 1.000000e+00 : f32
    %11 = vector.broadcast %cst : f32 to vector<8x128xf32>
    %12 = arith.addf %11, %10 : vector<8x128xf32>
    %13 = arith.divf %11, %12 : vector<8x128xf32>
    %14 = vector.broadcast %3 : vector<1x128xf32> to vector<8x128xf32>
    %15 = arith.subf %13, %14 : vector<8x128xf32>
    %c0_7 = arith.constant 0 : index
    %c0_8 = arith.constant 0 : index
    %16 = vector.load %arg6[%c0_7, %c0_8] : memref<8x128xf32, #tpu.memory_space<vmem>>, vector<8x128xf32>
    tpu.vector_store %arg6[%c0_7, %c0_8], %15 {strides = array<i32>} : memref<8x128xf32, #tpu.memory_space<vmem>>, vector<8x128xf32>,
    return
  }
  func.func @transform_0(%arg0: i32, %arg1: i32) -> (i32, i32) {
    %c0_i32 = arith.constant 0 : i32
    return %arg0, %arg1 : i32, i32
  }
  func.func @transform_1(%arg0: i32, %arg1: i32) -> (i32, i32) {
    %c0_i32 = arith.constant 0 : i32
    %c0_i32_0 = arith.constant 0 : i32
    return %c0_i32, %arg1 : i32, i32
  }
  func.func @transform_2(%arg0: i32, %arg1: i32) -> (i32, i32) {
    %c0_i32 = arith.constant 0 : i32
    %c0_i32_0 = arith.constant 0 : i32
    return %c0_i32, %arg1 : i32, i32
  }
  func.func @transform_3(%arg0: i32, %arg1: i32) -> (i32, i32) {
    %c0_i32 = arith.constant 0 : i32
    %c0_i32_0 = arith.constant 0 : i32
    return %c0_i32, %arg1 : i32, i32
  }
  func.func @transform_4(%arg0: i32, %arg1: i32) -> (i32, i32) {
    %c0_i32 = arith.constant 0 : i32
    return %arg0, %arg1 : i32, i32
  }
}

</mosaic_0001>

<llo_original>
// kernel: tpu_custom_call.1
$region0: #{tpu_custom_call.1}
  #allocation0 [shape = 'u32[]', space=smem, size = 0x4, offset = 0x4, fixed_abs, tag = 'smem constant byte address 0x4 - core index']
  #allocation1 [shape = 'u32[144,128]{1,0:T(1,128)}', space=vmem, size = 0x12000, scoped, tag = 'internal scratch']
  %s0 = inlined_call_operand.hbm [shape: f32[8,128], index: 0, kind: input, shape index: {}]
  %s1 = inlined_call_operand.vmem [shape: f32[1,128], index: 1, kind: input, shape index: {}]
  %s2 = inlined_call_operand.vmem [shape: f32[1,128], index: 2, kind: input, shape index: {}]
  %s3 = inlined_call_operand.vmem [shape: f32[1,128], index: 3, kind: input, shape index: {}]
  %s4 = inlined_call_operand.hbm [shape: f32[8,128], index: 4, kind: output, shape index: {}]
  %s5 = sld [smem:[#allocation0]]
  $region30: #{tpu_custom_call.1} parent=0
    _
  %s7 = ssub.s32 1, %s5
  %s8 = scalar_select 0, %s7, %s5
  $region1: #{tpu_custom_call.1} parent=0
    #allocation2 [shape = 'u8[4096]{0}', space=vmem, size = 0x1000, scoped, tag = 'input window, operand 0, single buffered']
    #allocation3 [shape = 's32[1]{0}', space=sflag, size = 0x4, scoped, tag = 'scoped memory for tpu_custom_call.1']
    #allocation4 [shape = 's32[1]{0}', space=sflag, size = 0x4, scoped, tag = 'scoped memory for tpu_custom_call.1']
    #allocation5 [shape = 'u8[4096]{0}', space=vmem, size = 0x1000, scoped, tag = 'output window, operand 0, single buffered']
    %9 = vsyncpa [#allocation3], 0
    %10 = vsyncpa [#allocation4], 0
    // Predicated region
    $region2: #{tpu_custom_call.1} parent=1 // pred_check
      _
    $region3: #{tpu_custom_call.1} parent=1 // pred_check_branch
      %12 = sbr.rel (0) target = $region5
    $region4: #{tpu_custom_call.1} parent=1 // pred_region
      %s14 = ssub.s32 128, 128
      %15 = vsyncadd [#allocation3], %s14
      %s17 = sshll.u32 [#allocation2], 4
      %s18 = int_to_ptr.vmem [resolvable:$true] %s17
      %20 = dma.hbm_to_vmem [thread:$0]  %s0, 128, %s18, [#allocation3]
    $region5: #{tpu_custom_call.1} parent=1 // pred_fallthru
      _
    // Predicated region
    $region6: #{tpu_custom_call.1} parent=1 // pred_check
      _
    $region7: #{tpu_custom_call.1} parent=1 // pred_check_branch
      %22 = sbr.rel (0) target = $region9
    $region8: #{tpu_custom_call.1} parent=1 // pred_region
      _
    $region9: #{tpu_custom_call.1} parent=1 // pred_fallthru
      _
    // Predicated region
    $region10: #{tpu_custom_call.1} parent=1 // pred_check
      _
    $region11: #{tpu_custom_call.1} parent=1 // pred_check_branch
      %24 = sbr.rel (0) target = $region13
    $region12: #{tpu_custom_call.1} parent=1 // pred_region
      _
    $region13: #{tpu_custom_call.1} parent=1 // pred_fallthru
      _
    // Predicated region
    $region14: #{tpu_custom_call.1} parent=1 // pred_check
      _
    $region15: #{tpu_custom_call.1} parent=1 // pred_check_branch
      %26 = sbr.rel (0) target = $region17
    $region16: #{tpu_custom_call.1} parent=1 // pred_region
      _
    $region17: #{tpu_custom_call.1} parent=1 // pred_fallthru
      _
    // Predicated region
    $region18: #{tpu_custom_call.1} parent=1 // pred_check
      _
    $region19: #{tpu_custom_call.1} parent=1 // pred_check_branch
      %28 = sbr.rel (0) target = $region21
    $region20: #{tpu_custom_call.1} parent=1 // pred_region
      %29 = dma.done [#allocation3], 128
    $region21: #{tpu_custom_call.1} parent=1 // pred_fallthru
      _
    %v30 = vld [vmem:[#allocation2] sm:$0xff]
    %v31 = vld [vmem:[%s1] sm:$0x1]
    %v32 = vld [vmem:[%s2] sm:$0x1]
    %v33 = vld [vmem:[%s3] sm:$0x1]
    %v34 = vadd.f32 %v30, 1.0
    %v35 = vlog2.pop %v34
    %v36 = vmul.f32 %v35, 0.6931472
    %v37 = vmul.f32 -0.5, %v30
    %v38 = vadd.f32 %v37, 1.0
    %v39 = vmul.f32 %v38, %v30
    %v40 = vand.u32 2147483647, %v30
    %vm41 = vcmp.lt.f32.partialorder %v40, 0.0004427343
    %v42 = vsel %vm41, %v39, %v36
    %v44 = vlaneseq
    %v45 = vshrl.u32 %v44, 7
    %v46 = vsub.s32 0, %v45
    %v47 = vrot.slane %v31, %v46
    %v49 = vmul.f32 %v42, %v47
    %v51 = vlaneseq
    %v52 = vshrl.u32 %v51, 7
    %v53 = vsub.s32 0, %v52
    %v54 = vrot.slane %v32, %v53
    %v56 = vadd.f32 %v49, %v54
    %v57 = vxor.u32 %v56, 2147483648
    %v58 = vmul.f32 %v57, 1.442695
    %v59 = vpow.pop %v58
    %v60 = vadd.f32 %v59, 1.0
    %v61 = vrcp.pop %v60
    %v62 = vmul.f32 1.0, %v61
    %v64 = vlaneseq
    %v65 = vshrl.u32 %v64, 7
    %v66 = vsub.s32 0, %v65
    %v67 = vrot.slane %v33, %v66
    %v69 = vsub.f32 %v62, %v67
    %70 = vst [vmem:[#allocation5] sm:$0xff] %v69
    // Predicated region
    $region22: #{tpu_custom_call.1} parent=1 // pred_check
      _
    $region23: #{tpu_custom_call.1} parent=1 // pred_check_branch
      %72 = sbr.rel (0) target = $region25
    $region24: #{tpu_custom_call.1} parent=1 // pred_region
      %s74 = ssub.s32 128, 128
      %75 = vsyncadd [#allocation4], %s74
      %s77 = sshll.u32 [#allocation5], 4
      %s78 = int_to_ptr.vmem [resolvable:$true] %s77
      %80 = dma.vmem_to_hbm [thread:$0]  %s78, 128, %s4, [#allocation4]
    $region25: #{tpu_custom_call.1} parent=1 // pred_fallthru
      _
    // Predicated region
    $region26: #{tpu_custom_call.1} parent=1 // pred_check
      _
    $region27: #{tpu_custom_call.1} parent=1 // pred_check_branch
      %82 = sbr.rel (0) target = $region29
    $region28: #{tpu_custom_call.1} parent=1 // pred_region
      %83 = dma.done [#allocation4], 128
    $region29: #{tpu_custom_call.1} parent=1 // pred_fallthru
      _
    %84 = vsyncpa [#allocation3], 1
    %85 = vsyncpa [#allocation4], 1

</llo_original>
